<compile_context>
chip_gen: v6e
topology: v6e:2x2x1
jax: 0.10.0
libtpu: 0.0.40
codegen_flags: <defaults>
</compile_context>

<pallas_src>
import jax
import jax.numpy as jnp
from jax.experimental import pallas as pl
from jax.experimental.pallas import tpu as pltpu


def seqmult_kernel(xy_ref, w12_ref, w3_ref, o_ref):
    # module0 (fused): z = [x | y] @ [[W1],[W2]] == x@W1 + y@W2  (single MXU pass)
    z = jnp.dot(xy_ref[...], w12_ref[...], preferred_element_type=jnp.float32)
    # module1: ReLU (VPU) + projection (MXU); cast z back to bf16 for the MXU
    z = jnp.maximum(z, 0.0).astype(w3_ref.dtype)
    out = jnp.dot(z, w3_ref[...], preferred_element_type=jnp.float32)
    o_ref[...] = out.astype(o_ref.dtype)


def seqmult_forward(x, y, w1, w2, w3, *, tm=128, compute_dtype=jnp.bfloat16):
    B, D = x.shape
    H = w1.shape[1]
    out_dtype = x.dtype

    # ---- module0 fusion (done once in the wrapper) ----
    xy = jnp.concatenate([x, y], axis=-1).astype(compute_dtype)            # [B, 2D]
    w12 = jnp.concatenate(
        [w1.astype(compute_dtype), w2.astype(compute_dtype)], axis=0)      # [2D, H]
    w3c = w3.astype(compute_dtype)                                         # [H, D]

    # ---- batch tiling (pad B up to a multiple of the sublane-aligned tile) ----
    if B >= 8:
        tm = max(8, (min(tm, B) // 8) * 8)
    else:
        tm = B  # block == full dim is also legal
    bp = pl.cdiv(B, tm) * tm
    if bp != B:
        xy = jnp.pad(xy, ((0, bp - B), (0, 0)))
    grid = (bp // tm,)

    # ---- VMEM budget: resident weights + double-buffered streamed tiles ----
    cbytes = jnp.dtype(compute_dtype).itemsize
    obytes = jnp.dtype(out_dtype).itemsize
    vmem_need = (
        2 * D * H * cbytes          # W12 resident
        + H * D * cbytes            # W3 resident
        + 2 * tm * 2 * D * cbytes   # xy, double-buffered
        + 2 * tm * D * obytes       # out, double-buffered
        + tm * H * 4                # f32 intermediate
    )
    vmem_limit = int(min(max(2 * vmem_need, 16 * 1024 * 1024), 60 * 1024 * 1024))

    out = pl.pallas_call(
        seqmult_kernel,
        out_shape=jax.ShapeDtypeStruct((bp, D), out_dtype),
        grid_spec=pltpu.PrefetchScalarGridSpec(
            num_scalar_prefetch=0,
            grid=grid,
            in_specs=[
                pl.BlockSpec((tm, 2 * D), lambda i: (i, 0)),   # xy: streamed per tile
                pl.BlockSpec((2 * D, H), lambda i: (0, 0)),    # W12: VMEM-resident
                pl.BlockSpec((H, D), lambda i: (0, 0)),        # W3:  VMEM-resident
            ],
            out_specs=pl.BlockSpec((tm, D), lambda i: (i, 0)),
        ),
        compiler_params=pltpu.CompilerParams(
            dimension_semantics=("parallel",),   # v7x: shard batch tiles over 2 TCs
            vmem_limit_bytes=vmem_limit,
        ),
    )(xy, w12, w3c)
    return out[:B]


def seqmult_reference(x, y, w1, w2, w3):
    z = x @ w1 + y @ w2
    z = jnp.maximum(z, 0.0)
    return z @ w3


if __name__ == "__main__":
    # Batch large enough to exercise the batch-tiled grid (2 tiles of 128 rows).
    B, D, H = 256, 128, 128

    key = jax.random.PRNGKey(0)
    kx, ky, k1, k2, k3 = jax.random.split(key, 5)
    x = jax.random.normal(kx, (B, D), dtype=jnp.float32)
    y = jax.random.normal(ky, (B, D), dtype=jnp.float32)
    # deterministic synthetic parameters (no checkpoint load)
    w1 = jax.random.normal(k1, (D, H), dtype=jnp.float32) * 0.05
    w2 = jax.random.normal(k2, (D, H), dtype=jnp.float32) * 0.05
    w3 = jax.random.normal(k3, (H, D), dtype=jnp.float32) * 0.05

    out = seqmult_forward(x, y, w1, w2, w3)
    out = jax.block_until_ready(out)

    ref = seqmult_reference(x, y, w1, w2, w3)
    assert out.shape == (B, D)
    assert out.dtype == x.dtype
    # bf16 compute path -> loosened tolerance vs the f32 reference
    assert jnp.allclose(out, ref, atol=5e-2, rtol=5e-2), float(
        jnp.max(jnp.abs(out - ref))
    )

    print("KERNEL_OK")
</pallas_src>

<mosaic_0001>
module attributes {stable_mosaic.version = 11 : i64} {
  func.func @seqmult_kernel(%arg0: i32, %arg1: memref<128x256xbf16, #tpu.memory_space<vmem>>, %arg2: memref<256x128xbf16, #tpu.memory_space<vmem>>, %arg3: memref<128x128xbf16, #tpu.memory_space<vmem>>, %arg4: memref<128x128xf32, #tpu.memory_space<vmem>>) attributes {dimension_semantics = [#tpu.dimension_semantics<parallel>], iteration_bounds = array<i64: 2>, scalar_prefetch = 0 : i64, scratch_operands = 0 : i64, tpu.core_type = #tpu.core_type<tc>, window_params = [{transform_indices = @transform_0, window_bounds = array<i64: 128, 256>}, {pipeline_mode = #tpu.pipeline_mode<synchronous>, transform_indices = @transform_1, window_bounds = array<i64: 256, 128>}, {pipeline_mode = #tpu.pipeline_mode<synchronous>, transform_indices = @transform_2, window_bounds = array<i64: 128, 128>}, {transform_indices = @transform_3, window_bounds = array<i64: 128, 128>}]} {
    %c0 = arith.constant 0 : index
    %c0_0 = arith.constant 0 : index
    %0 = vector.load %arg1[%c0, %c0_0] : memref<128x256xbf16, #tpu.memory_space<vmem>>, vector<128x256xbf16>
    %c0_1 = arith.constant 0 : index
    %c0_2 = arith.constant 0 : index
    %1 = vector.load %arg2[%c0_1, %c0_2] : memref<256x128xbf16, #tpu.memory_space<vmem>>, vector<256x128xbf16>
    %cst = arith.constant dense<0.000000e+00> : vector<128x128xf32>
    %2 = tpu.matmul %0, %1, %cst {dimension_numbers = #tpu.dot_dimension_numbers<[1], [0], [0], [1], [0, 0, 1, 1], [], []>} : vector<128x256xbf16>, vector<256x128xbf16>, vector<128x128xf32> -> vector<128x128xf32>
    %cst_3 = arith.constant 0.000000e+00 : f32
    %3 = vector.broadcast %cst_3 : f32 to vector<128x128xf32>
    %4 = arith.maximumf %2, %3 : vector<128x128xf32>
    %5 = arith.truncf %4 : vector<128x128xf32> to vector<128x128xbf16>
    %c0_4 = arith.constant 0 : index
    %c0_5 = arith.constant 0 : index
    %6 = vector.load %arg3[%c0_4, %c0_5] : memref<128x128xbf16, #tpu.memory_space<vmem>>, vector<128x128xbf16>
    %cst_6 = arith.constant dense<0.000000e+00> : vector<128x128xf32>
    %7 = tpu.matmul %5, %6, %cst_6 {dimension_numbers = #tpu.dot_dimension_numbers<[1], [0], [0], [1], [0, 0, 1, 1], [], []>} : vector<128x128xbf16>, vector<128x128xbf16>, vector<128x128xf32> -> vector<128x128xf32>
    %c0_7 = arith.constant 0 : index
    %c0_8 = arith.constant 0 : index
    %8 = vector.load %arg4[%c0_7, %c0_8] : memref<128x128xf32, #tpu.memory_space<vmem>>, vector<128x128xf32>
    tpu.vector_store %arg4[%c0_7, %c0_8], %7 {strides = array<i32>} : memref<128x128xf32, #tpu.memory_space<vmem>>, vector<128x128xf32>,
    return
  }
  func.func @transform_0(%arg0: i32) -> (i32, i32) {
    %c0_i32 = arith.constant 0 : i32
    %c0_i32_0 = arith.constant 0 : i32
    return %arg0, %c0_i32 : i32, i32
  }
  func.func @transform_1(%arg0: i32) -> (i32, i32) {
    %c0_i32 = arith.constant 0 : i32
    %c0_i32_0 = arith.constant 0 : i32
    %c0_i32_1 = arith.constant 0 : i32
    return %c0_i32, %c0_i32_0 : i32, i32
  }
  func.func @transform_2(%arg0: i32) -> (i32, i32) {
    %c0_i32 = arith.constant 0 : i32
    %c0_i32_0 = arith.constant 0 : i32
    %c0_i32_1 = arith.constant 0 : i32
    return %c0_i32, %c0_i32_0 : i32, i32
  }
  func.func @transform_3(%arg0: i32) -> (i32, i32) {
    %c0_i32 = arith.constant 0 : i32
    %c0_i32_0 = arith.constant 0 : i32
    return %arg0, %c0_i32 : i32, i32
  }
}

</mosaic_0001>

<llo_original>
// kernel: tpu_custom_call.1
$region0: #{tpu_custom_call.1}
  #allocation0 [shape = 'u32[]', space=smem, size = 0x4, offset = 0x4, fixed_abs, tag = 'smem constant byte address 0x4 - core index']
  #allocation1 [shape = 'u32[144,128]{1,0:T(1,128)}', space=vmem, size = 0x12000, scoped, tag = 'internal scratch']
  %s0 = inlined_call_operand.hbm [shape: bf16[256,256], index: 0, kind: input, shape index: {}]
  %s1 = inlined_call_operand.hbm [shape: bf16[256,128], index: 1, kind: input, shape index: {}]
  %s2 = inlined_call_operand.hbm [shape: bf16[128,128], index: 2, kind: input, shape index: {}]
  %s3 = inlined_call_operand.hbm [shape: f32[256,128], index: 3, kind: output, shape index: {}]
  %s4 = sld [smem:[#allocation0]]
  $region57: #{tpu_custom_call.1} parent=0
    _
  %s6 = ssub.s32 1, %s4
  %s7 = scalar_select 0, %s6, %s4
  $region1: #{tpu_custom_call.1} parent=0
    #allocation2 [shape = 'u8[131072]{0}', space=vmem, size = 0x20000, scoped, tag = 'input window, operand 0']
    #allocation3 [shape = 's32[2]{0}', space=sflag, size = 0x8, scoped, tag = 'scoped memory for tpu_custom_call.1']
    #allocation4 [shape = 's32[2]{0}', space=sflag, size = 0x8, scoped, tag = 'scoped memory for tpu_custom_call.1']
    #allocation5 [shape = 'u8[65536]{0}', space=vmem, size = 0x10000, scoped, tag = 'input window, operand 1, single buffered']
    #allocation6 [shape = 's32[1]{0}', space=sflag, size = 0x4, scoped, tag = 'scoped memory for tpu_custom_call.1']
    #allocation7 [shape = 'u8[32768]{0}', space=vmem, size = 0x8000, scoped, tag = 'input window, operand 2, single buffered']
    #allocation8 [shape = 'u8[131072]{0}', space=vmem, size = 0x20000, scoped, tag = 'output window, operand 0']
    %8 = vsyncpa [#allocation3], 0
    %s9 = scalar_lea.sflag [#allocation3], 1
    %10 = vsyncpa %s9, 0
    %11 = vsyncpa [#allocation6], 0
    %12 = vsyncpa [#allocation4], 0
    %s13 = scalar_lea.sflag [#allocation4], 1
    %14 = vsyncpa %s13, 0
    loop: start=0, step=1, limit=4
    $region2: #{tpu_custom_call.1} parent=1 // loop_pre_header
      _
    $region3: #{tpu_custom_call.1} parent=1 // loop_header
      %s16 = sphi 0, %s20
      %p17 = scmp.ge.s32.totalorder %s16, 4
      %s26 = sphi 0, %s28
      %s29 = sphi 0, %s26
      %s30 = sphi 0, %s29
      %s46 = sphi 0, %s30
      %s50 = sphi 0, %s50
      %s52 = sphi 0, %s50
      %s53 = sphi 0, %s52
      %s67 = sphi 0, %s53
      %s71 = sphi 0, %s71
      %s73 = sphi 0, %s71
      %s74 = sphi 0, %s73
      %s88 = sphi 0, %s74
      %s94 = sphi 0, %s96
      %s97 = sphi 0, %s94
      %s98 = sphi 0, %s97
      %s114 = sphi 0, %s98
    $region4: #{tpu_custom_call.1} parent=1 // loop_header_branch
      %19 = sbr.rel (%p17) target = $region8
    $region5: #{tpu_custom_call.1} parent=1 // loop_body
      %s21 = ssub.s32 %s16, 1
      %s22 = ssub.s32 %s16, 2
      %s23 = sadd.s32 %s16, 1
      %s24 = ssub.s32 %s16, %s23
      %p25 = scmp.eq.s32.totalorder %s24, 0
      %s27 = sadd.s32 %s26, 1
      %s28 = scalar_select %p25, %s26, %s27
      %p31 = pneg %p25
      %p32 = scmp.eq.s32.totalorder %s16, 1
      %p33 = por %p31, %p32
      %p34 = scmp.ne.s32.totalorder %s26, %s29
      %p35 = scmp.eq.s32.totalorder %s16, 0
      %p36 = por %p34, %p35
      %p37 = scmp.ne.s32.totalorder %s26, %s29
      %p38 = scmp.eq.s32.totalorder %s21, 1
      %p39 = por %p37, %p38
      %p40 = scmp.ne.s32.totalorder %s29, %s30
      %p41 = scmp.eq.s32.totalorder %s21, 0
      %p42 = por %p40, %p41
      %p43 = scmp.ne.s32.totalorder %s29, %s30
      %p44 = scmp.eq.s32.totalorder %s22, 1
      %p45 = por %p43, %p44
      %p47 = scmp.ne.s32.totalorder %s30, %s46
      %p48 = scmp.eq.s32.totalorder %s22, 0
      %p49 = por %p47, %p48
      %s51 = sadd.s32 %s50, 1
      %p54 = scmp.eq.s32.totalorder %s16, 1
      %p55 = scmp.ne.s32.totalorder %s50, %s52
      %p56 = scmp.eq.s32.totalorder %s16, 0
      %p57 = por %p55, %p56
      %p58 = scmp.ne.s32.totalorder %s50, %s52
      %p59 = scmp.eq.s32.totalorder %s21, 1
      %p60 = por %p58, %p59
      %p61 = scmp.ne.s32.totalorder %s52, %s53
      %p62 = scmp.eq.s32.totalorder %s21, 0
      %p63 = por %p61, %p62
      %p64 = scmp.ne.s32.totalorder %s52, %s53
      %p65 = scmp.eq.s32.totalorder %s22, 1
      %p66 = por %p64, %p65
      %p68 = scmp.ne.s32.totalorder %s53, %s67
      %p69 = scmp.eq.s32.totalorder %s22, 0
      %p70 = por %p68, %p69
      %s72 = sadd.s32 %s71, 1
      %p75 = scmp.eq.s32.totalorder %s16, 1
      %p76 = scmp.ne.s32.totalorder %s71, %s73
      %p77 = scmp.eq.s32.totalorder %s16, 0
      %p78 = por %p76, %p77
      %p79 = scmp.ne.s32.totalorder %s71, %s73
      %p80 = scmp.eq.s32.totalorder %s21, 1
      %p81 = por %p79, %p80
      %p82 = scmp.ne.s32.totalorder %s73, %s74
      %p83 = scmp.eq.s32.totalorder %s21, 0
      %p84 = por %p82, %p83
      %p85 = scmp.ne.s32.totalorder %s73, %s74
      %p86 = scmp.eq.s32.totalorder %s22, 1
      %p87 = por %p85, %p86
      %p89 = scmp.ne.s32.totalorder %s74, %s88
      %p90 = scmp.eq.s32.totalorder %s22, 0
      %p91 = por %p89, %p90
      %s92 = ssub.s32 %s16, %s23
      %p93 = scmp.eq.s32.totalorder %s92, 0
      %s95 = sadd.s32 %s94, 1
      %s96 = scalar_select %p93, %s94, %s95
      %p99 = pneg %p93
      %p100 = scmp.eq.s32.totalorder %s16, 1
      %p101 = por %p99, %p100
      %p102 = scmp.ne.s32.totalorder %s94, %s97
      %p103 = scmp.eq.s32.totalorder %s16, 0
      %p104 = por %p102, %p103
      %p105 = scmp.ne.s32.totalorder %s94, %s97
      %p106 = scmp.eq.s32.totalorder %s21, 1
      %p107 = por %p105, %p106
      %p108 = scmp.ne.s32.totalorder %s97, %s98
      %p109 = scmp.eq.s32.totalorder %s21, 0
      %p110 = por %p108, %p109
      %p111 = scmp.ne.s32.totalorder %s97, %s98
      %p112 = scmp.eq.s32.totalorder %s22, 1
      %p113 = por %p111, %p112
      %p115 = scmp.ne.s32.totalorder %s98, %s114
      %p116 = scmp.eq.s32.totalorder %s22, 0
      %p117 = por %p115, %p116
      %p118 = scmp.le.s32.totalorder 1, %s16
      %p119 = scmp.lt.s32.totalorder %s16, 3
      %p120 = pnand %p118, %p119
      %p121 = pneg %p120
      // Predicated region
      $region9: #{tpu_custom_call.1} parent=5 // pred_check
        _
      $region10: #{tpu_custom_call.1} parent=5 // pred_check_branch
        %123 = sbr.rel (%p120) target = $region12
      $region11: #{tpu_custom_call.1} parent=5 // pred_region
        %s124 = ssub.s32 %s16, 1
        // Predicated region
        $region13: #{tpu_custom_call.1} parent=11 // pred_check
          %p125 = pneg %p63
        $region14: #{tpu_custom_call.1} parent=11 // pred_check_branch
          %127 = sbr.rel (%p125) target = $region16
        $region15: #{tpu_custom_call.1} parent=11 // pred_region
          %s129 = ssub.s32 2048, 2048
          %130 = vsyncadd [#allocation6], %s129
          %s131 = sshll.u32 [#allocation5], 4
          %s132 = int_to_ptr.vmem [resolvable:$true] %s131
          %137 = dma.hbm_to_vmem [thread:$0]  %s1, 2048, %s132, [#allocation6], 64, 64, 4
        $region16: #{tpu_custom_call.1} parent=11 // pred_fallthru
          _
        // Predicated region
        $region17: #{tpu_custom_call.1} parent=11 // pred_check
          %p138 = pneg %p84
        $region18: #{tpu_custom_call.1} parent=11 // pred_check_branch
          %140 = sbr.rel (%p138) target = $region20
        $region19: #{tpu_custom_call.1} parent=11 // pred_region
          %s142 = ssub.s32 1024, 1024
          %143 = vsyncadd [#allocation6], %s142
          %s144 = sshll.u32 [#allocation7], 4
          %s145 = int_to_ptr.vmem [resolvable:$true] %s144
          %150 = dma.hbm_to_vmem [thread:$0]  %s2, 1024, %s145, [#allocation6], 64, 64, 4
        $region20: #{tpu_custom_call.1} parent=11 // pred_fallthru
          _
      $region12: #{tpu_custom_call.1} parent=5 // pred_fallthru
        _
      %p151 = scmp.lt.s32.totalorder %s16, 2
      // Predicated region
      $region21: #{tpu_custom_call.1} parent=5 // pred_check
        %p152 = pneg %p151
      $region22: #{tpu_custom_call.1} parent=5 // pred_check_branch
        %154 = sbr.rel (%p152) target = $region24
      $region23: #{tpu_custom_call.1} parent=5 // pred_region
        // Predicated region
        $region25: #{tpu_custom_call.1} parent=23 // pred_check
          %p155 = pneg %p36
        $region26: #{tpu_custom_call.1} parent=23 // pred_check_branch
          %157 = sbr.rel (%p155) target = $region28
        $region27: #{tpu_custom_call.1} parent=23 // pred_region
          %s158 = sand.u32 %s26, 1
          %s159 = scalar_lea.sflag [#allocation3], %s158
          %s160 = sand.u32 %s26, 1
          %s161 = smul.addr %s160, 128
          %s162 = scalar_lea.vmem [#allocation2], %s161
          %s163 = smul.u32 16, %s16
          %s165 = ssub.s32 2048, 2048
          %166 = vsyncadd %s159, %s165
          %s167 = smul.addr %s163, 2
          %s168 = smul.addr %s167, 64
          %s169 = scalar_lea.hbm %s0, %s168
          %s170 = sshll.u32 %s162, 4
          %s171 = int_to_ptr.vmem [resolvable:$true] %s170
          %176 = dma.hbm_to_vmem [thread:$0]  %s169, 2048, %s171, %s159, 128, 128, 8
        $region28: #{tpu_custom_call.1} parent=23 // pred_fallthru
          _
      $region24: #{tpu_custom_call.1} parent=5 // pred_fallthru
        _
      %p177 = scmp.le.s32.totalorder 1, %s16
      %p178 = scmp.lt.s32.totalorder %s16, 3
      %p179 = pnand %p177, %p178
      %p180 = pneg %p179
      // Predicated region
      $region29: #{tpu_custom_call.1} parent=5 // pred_check
        _
      $region30: #{tpu_custom_call.1} parent=5 // pred_check_branch
        %182 = sbr.rel (%p179) target = $region32
      $region31: #{tpu_custom_call.1} parent=5 // pred_region
        %s183 = ssub.s32 %s16, 1
        %s184 = sand.u32 %s29, 1
        %s185 = scalar_lea.sflag [#allocation3], %s184
        %s186 = sand.u32 %s29, 1
        %s187 = smul.addr %s186, 128
        %s188 = scalar_lea.vmem [#allocation2], %s187
        // Predicated region
        $region33: #{tpu_custom_call.1} parent=31 // pred_check
          %p189 = pneg %p42
        $region34: #{tpu_custom_call.1} parent=31 // pred_check_branch
          %191 = sbr.rel (%p189) target = $region36
        $region35: #{tpu_custom_call.1} parent=31 // pred_region
          %192 = dma.done %s185, 2048
        $region36: #{tpu_custom_call.1} parent=31 // pred_fallthru
          _
        // Predicated region
        $region37: #{tpu_custom_call.1} parent=31 // pred_check
          %p193 = pneg %p63
        $region38: #{tpu_custom_call.1} parent=31 // pred_check_branch
          %195 = sbr.rel (%p193) target = $region40
        $region39: #{tpu_custom_call.1} parent=31 // pred_region
          %196 = dma.done [#allocation6], 2048
        $region40: #{tpu_custom_call.1} parent=31 // pred_fallthru
          _
        // Predicated region
        $region41: #{tpu_custom_call.1} parent=31 // pred_check
          %p197 = pneg %p84
        $region42: #{tpu_custom_call.1} parent=31 // pred_check_branch
          %199 = sbr.rel (%p197) target = $region44
        $region43: #{tpu_custom_call.1} parent=31 // pred_region
          %200 = dma.done [#allocation6], 1024
        $region44: #{tpu_custom_call.1} parent=31 // pred_fallthru
          _
        %s201 = sand.u32 %s29, 1
        %s202 = scalar_lea.sflag [#allocation3], %s201
        %s203 = sand.u32 %s29, 1
        %s204 = smul.addr %s203, 128
        %s205 = scalar_lea.vmem [#allocation2], %s204
        %p206 = pneg %p42
        %p207 = pneg %p39
        %p208 = pneg %p63
        %p209 = pneg %p60
        %p210 = pneg %p84
        %p211 = pneg %p81
        %p212 = pneg %p110
        %p213 = pneg %p107
        %s214 = sand.u32 %s97, 1
        %s215 = scalar_lea.sflag [#allocation4], %s214
        %s216 = sand.u32 %s97, 1
        %s217 = smul.addr %s216, 128
        %s218 = scalar_lea.vmem [#allocation8], %s217
        %s219 = smul.u32 16, %s21
        %s220 = smul.u32 16, %s21
        %v222 = vld [vmem:[%s188] sm:$0xff]
        %v223 = vld [vmem:[%s188 + $0x8] sm:$0xff]
        %v224 = vld [vmem:[%s188 + $0x10] sm:$0xff]
        %v225 = vld [vmem:[%s188 + $0x18] sm:$0xff]
        %v226 = vld [vmem:[%s188 + $0x20] sm:$0xff]
        %v227 = vld [vmem:[%s188 + $0x28] sm:$0xff]
        %v228 = vld [vmem:[%s188 + $0x30] sm:$0xff]
        %v229 = vld [vmem:[%s188 + $0x38] sm:$0xff]
        %v230 = vld [vmem:[%s188 + $0x40] sm:$0xff]
        %v231 = vld [vmem:[%s188 + $0x48] sm:$0xff]
        %v232 = vld [vmem:[%s188 + $0x50] sm:$0xff]
        %v233 = vld [vmem:[%s188 + $0x58] sm:$0xff]
        %v234 = vld [vmem:[%s188 + $0x60] sm:$0xff]
        %v235 = vld [vmem:[%s188 + $0x68] sm:$0xff]
        %v236 = vld [vmem:[%s188 + $0x70] sm:$0xff]
        %v237 = vld [vmem:[%s188 + $0x78] sm:$0xff]
        %v238 = vld [vmem:[#allocation5] sm:$0xf]
        %v239 = vld [vmem:[#allocation5 + $0x4] sm:$0xf]
        %v240 = vld [vmem:[#allocation5 + $0x8] sm:$0xf]
        %v241 = vld [vmem:[#allocation5 + $0xc] sm:$0xf]
        %v242 = vld [vmem:[#allocation5 + $0x10] sm:$0xf]
        %v243 = vld [vmem:[#allocation5 + $0x14] sm:$0xf]
        %v244 = vld [vmem:[#allocation5 + $0x18] sm:$0xf]
        %v245 = vld [vmem:[#allocation5 + $0x1c] sm:$0xf]
        %v246 = vld [vmem:[#allocation5 + $0x20] sm:$0xf]
        %v247 = vld [vmem:[#allocation5 + $0x24] sm:$0xf]
        %v248 = vld [vmem:[#allocation5 + $0x28] sm:$0xf]
        %v249 = vld [vmem:[#allocation5 + $0x2c] sm:$0xf]
        %v250 = vld [vmem:[#allocation5 + $0x30] sm:$0xf]
        %v251 = vld [vmem:[#allocation5 + $0x34] sm:$0xf]
        %v252 = vld [vmem:[#allocation5 + $0x38] sm:$0xf]
        %v253 = vld [vmem:[#allocation5 + $0x3c] sm:$0xf]
        %v254 = vld [vmem:[#allocation5 + $0x40] sm:$0xf]
        %v255 = vld [vmem:[#allocation5 + $0x44] sm:$0xf]
        %v256 = vld [vmem:[#allocation5 + $0x48] sm:$0xf]
        %v257 = vld [vmem:[#allocation5 + $0x4c] sm:$0xf]
        %v258 = vld [vmem:[#allocation5 + $0x50] sm:$0xf]
        %v259 = vld [vmem:[#allocation5 + $0x54] sm:$0xf]
        %v260 = vld [vmem:[#allocation5 + $0x58] sm:$0xf]
        %v261 = vld [vmem:[#allocation5 + $0x5c] sm:$0xf]
        %v262 = vld [vmem:[#allocation5 + $0x60] sm:$0xf]
        %v263 = vld [vmem:[#allocation5 + $0x64] sm:$0xf]
        %v264 = vld [vmem:[#allocation5 + $0x68] sm:$0xf]
        %v265 = vld [vmem:[#allocation5 + $0x6c] sm:$0xf]
        %v266 = vld [vmem:[#allocation5 + $0x70] sm:$0xf]
        %v267 = vld [vmem:[#allocation5 + $0x74] sm:$0xf]
        %v268 = vld [vmem:[#allocation5 + $0x78] sm:$0xf]
        %v269 = vld [vmem:[#allocation5 + $0x7c] sm:$0xf]
        %v286 = vunpack.c.l.b16 %v222
        %v287 = vunpack.c.h.b16 %v222
        %v288 = vunpack.c.l.b16 %v223
        %v289 = vunpack.c.h.b16 %v223
        %v290 = vunpack.c.l.b16 %v224
        %v291 = vunpack.c.h.b16 %v224
        %v292 = vunpack.c.l.b16 %v225
        %v293 = vunpack.c.h.b16 %v225
        %v294 = vunpack.c.l.b16 %v226
        %v295 = vunpack.c.h.b16 %v226
        %v296 = vunpack.c.l.b16 %v227
        %v297 = vunpack.c.h.b16 %v227
        %v298 = vunpack.c.l.b16 %v228
        %v299 = vunpack.c.h.b16 %v228
        %v300 = vunpack.c.l.b16 %v229
        %v301 = vunpack.c.h.b16 %v229
        %v302 = vunpack.c.l.b16 %v230
        %v303 = vunpack.c.h.b16 %v230
        %v304 = vunpack.c.l.b16 %v231
        %v305 = vunpack.c.h.b16 %v231
        %v306 = vunpack.c.l.b16 %v232
        %v307 = vunpack.c.h.b16 %v232
        %v308 = vunpack.c.l.b16 %v233
        %v309 = vunpack.c.h.b16 %v233
        %v310 = vunpack.c.l.b16 %v234
        %v311 = vunpack.c.h.b16 %v234
        %v312 = vunpack.c.l.b16 %v235
        %v313 = vunpack.c.h.b16 %v235
        %v314 = vunpack.c.l.b16 %v236
        %v315 = vunpack.c.h.b16 %v236
        %v316 = vunpack.c.l.b16 %v237
        %v317 = vunpack.c.h.b16 %v237
        %v318 = vpack.c.b16 %v288, %v286
        %v319 = vpack.c.b16 %v289, %v287
        %v320 = vpack.c.b16 %v292, %v290
        %v321 = vpack.c.b16 %v293, %v291
        %v322 = vpack.c.b16 %v296, %v294
        %v323 = vpack.c.b16 %v297, %v295
        %v324 = vpack.c.b16 %v300, %v298
        %v325 = vpack.c.b16 %v301, %v299
        %v326 = vpack.c.b16 %v304, %v302
        %v327 = vpack.c.b16 %v305, %v303
        %v328 = vpack.c.b16 %v308, %v306
        %v329 = vpack.c.b16 %v309, %v307
        %v330 = vpack.c.b16 %v312, %v310
        %v331 = vpack.c.b16 %v313, %v311
        %v332 = vpack.c.b16 %v316, %v314
        %v333 = vpack.c.b16 %v317, %v315
        %v382 = vunpack.c.l.b16 %v238
        %v383 = vunpack.c.l.b16 %v239
        %v384 = vunpack.c.l.b16 %v240
        %v385 = vunpack.c.l.b16 %v241
        %v386 = vunpack.c.l.b16 %v242
        %v387 = vunpack.c.l.b16 %v243
        %v388 = vunpack.c.l.b16 %v244
        %v389 = vunpack.c.l.b16 %v245
        %v390 = vunpack.c.l.b16 %v246
        %v391 = vunpack.c.l.b16 %v247
        %v392 = vunpack.c.l.b16 %v248
        %v393 = vunpack.c.l.b16 %v249
        %v394 = vunpack.c.l.b16 %v250
        %v395 = vunpack.c.l.b16 %v251
        %v396 = vunpack.c.l.b16 %v252
        %v397 = vunpack.c.l.b16 %v253
        %v398 = vunpack.c.l.b16 %v254
        %v399 = vunpack.c.l.b16 %v255
        %v400 = vunpack.c.l.b16 %v256
        %v401 = vunpack.c.l.b16 %v257
        %v402 = vunpack.c.l.b16 %v258
        %v403 = vunpack.c.l.b16 %v259
        %v404 = vunpack.c.l.b16 %v260
        %v405 = vunpack.c.l.b16 %v261
        %v406 = vunpack.c.l.b16 %v262
        %v407 = vunpack.c.l.b16 %v263
        %v408 = vunpack.c.l.b16 %v264
        %v409 = vunpack.c.l.b16 %v265
        %v410 = vunpack.c.l.b16 %v266
        %v411 = vunpack.c.l.b16 %v267
        %v412 = vunpack.c.l.b16 %v268
        %v413 = vunpack.c.l.b16 %v269
        %v414 = vpack.c.b16 %v383, %v382
        %v415 = vpack.c.b16 %v385, %v384
        %v416 = vpack.c.b16 %v387, %v386
        %v417 = vpack.c.b16 %v389, %v388
        %v418 = vpack.c.b16 %v391, %v390
        %v419 = vpack.c.b16 %v393, %v392
        %v420 = vpack.c.b16 %v395, %v394
        %v421 = vpack.c.b16 %v397, %v396
        %v422 = vpack.c.b16 %v399, %v398
        %v423 = vpack.c.b16 %v401, %v400
        %v424 = vpack.c.b16 %v403, %v402
        %v425 = vpack.c.b16 %v405, %v404
        %v426 = vpack.c.b16 %v407, %v406
        %v427 = vpack.c.b16 %v409, %v408
        %v428 = vpack.c.b16 %v411, %v410
        %v429 = vpack.c.b16 %v413, %v412
        %446 = vmatprep.subr.bf16.mxu0 0
        %447 = vmatpush1.bf16.msra.mxu0 %v421
        %448 = vmatprep.subr.bf16.mxu0 0
        %449 = vmatpush1.bf16.msra.mxu0 %v420
        %450 = vmatprep.subr.bf16.mxu0 0
        %451 = vmatpush1.bf16.msra.mxu0 %v419
        %452 = vmatprep.subr.bf16.mxu0 0
        %453 = vmatpush1.bf16.msra.mxu0 %v418
        %454 = vmatprep.subr.bf16.mxu0 0
        %455 = vmatpush1.bf16.msra.mxu0 %v417
        %456 = vmatprep.subr.bf16.mxu0 0
        %457 = vmatpush1.bf16.msra.mxu0 %v416
        %458 = vmatprep.subr.bf16.mxu0 0
        %459 = vmatpush1.bf16.msra.mxu0 %v415
        %460 = vmatprep.subr.bf16.mxu0 0
        %461 = vmatpush1.bf16.msra.mxu0 %v414
        %462 = vmatprep.subr.bf16.mxu0 0
        %463 = vmatpush2.bf16.msra.mxu0 %v429
        %464 = vmatprep.subr.bf16.mxu0 0
        %465 = vmatpush2.bf16.msra.mxu0 %v428
        %466 = vmatprep.subr.bf16.mxu0 0
        %467 = vmatpush2.bf16.msra.mxu0 %v427
        %468 = vmatprep.subr.bf16.mxu0 0
        %469 = vmatpush2.bf16.msra.mxu0 %v426
        %470 = vmatprep.subr.bf16.mxu0 0
        %471 = vmatpush2.bf16.msra.mxu0 %v425
        %472 = vmatprep.subr.bf16.mxu0 0
        %473 = vmatpush2.bf16.msra.mxu0 %v424
        %474 = vmatprep.subr.bf16.mxu0 0
        %475 = vmatpush2.bf16.msra.mxu0 %v423
        %476 = vmatprep.subr.bf16.mxu0 0
        %477 = vmatpush2.bf16.msra.mxu0 %v422
        %478 = vmatprep.mubr.bf16.mxu0 %v319
        %479 = vmatmul.mubr.bf16.gmra.mxu0 %v318
        %v480 = vpop.f32.mrf.mxu0
        %v481 = vadd.f32 0.0, %v480
        %v482 = vpop.f32.mrf.mxu0
        %v483 = vpop.f32.mrf.mxu0
        %v484 = vadd.f32 0.0, %v483
        %v485 = vpop.f32.mrf.mxu0
        %486 = vmatprep.mubr.bf16.mxu0 %v321
        %487 = vmatmul.mubr.bf16.gmra.mxu0 %v320
        %v488 = vpop.f32.mrf.mxu0
        %v489 = vadd.f32 0.0, %v488
        %v490 = vpop.f32.mrf.mxu0
        %v491 = vpop.f32.mrf.mxu0
        %v492 = vadd.f32 0.0, %v491
        %v493 = vpop.f32.mrf.mxu0
        %494 = vmatprep.mubr.bf16.mxu0 %v323
        %495 = vmatmul.mubr.bf16.gmra.mxu0 %v322
        %v496 = vpop.f32.mrf.mxu0
        %v497 = vadd.f32 0.0, %v496
        %v498 = vpop.f32.mrf.mxu0
        %v499 = vpop.f32.mrf.mxu0
        %v500 = vadd.f32 0.0, %v499
        %v501 = vpop.f32.mrf.mxu0
        %502 = vmatprep.mubr.bf16.mxu0 %v325
        %503 = vmatmul.mubr.bf16.gmra.mxu0 %v324
        %v504 = vpop.f32.mrf.mxu0
        %v505 = vadd.f32 0.0, %v504
        %v506 = vpop.f32.mrf.mxu0
        %v507 = vpop.f32.mrf.mxu0
        %v508 = vadd.f32 0.0, %v507
        %v509 = vpop.f32.mrf.mxu0
        %510 = vmatprep.mubr.bf16.mxu0 %v327
        %511 = vmatmul.mubr.bf16.gmra.mxu0 %v326
        %v512 = vpop.f32.mrf.mxu0
        %v513 = vadd.f32 0.0, %v512
        %v514 = vpop.f32.mrf.mxu0
        %v515 = vpop.f32.mrf.mxu0
        %v516 = vadd.f32 0.0, %v515
        %v517 = vpop.f32.mrf.mxu0
        %518 = vmatprep.mubr.bf16.mxu0 %v329
        %519 = vmatmul.mubr.bf16.gmra.mxu0 %v328
        %v520 = vpop.f32.mrf.mxu0
        %v521 = vadd.f32 0.0, %v520
        %v522 = vpop.f32.mrf.mxu0
        %v523 = vpop.f32.mrf.mxu0
        %v524 = vadd.f32 0.0, %v523
        %v525 = vpop.f32.mrf.mxu0
        %526 = vmatprep.mubr.bf16.mxu0 %v331
        %527 = vmatmul.mubr.bf16.gmra.mxu0 %v330
        %v528 = vpop.f32.mrf.mxu0
        %v529 = vadd.f32 0.0, %v528
        %v530 = vpop.f32.mrf.mxu0
        %v531 = vpop.f32.mrf.mxu0
        %v532 = vadd.f32 0.0, %v531
        %v533 = vpop.f32.mrf.mxu0
        %534 = vmatprep.mubr.bf16.mxu0 %v333
        %535 = vmatmul.mubr.bf16.gmra.mxu0 %v332
        %v536 = vpop.f32.mrf.mxu0
        %v537 = vadd.f32 0.0, %v536
        %v538 = vpop.f32.mrf.mxu0
        %v539 = vpop.f32.mrf.mxu0
        %v540 = vadd.f32 0.0, %v539
        %v541 = vpop.f32.mrf.mxu0
        %542 = vdwg.mxu0
        %v543 = vmax.f32 %v481, 0.0
        %v544 = vmax.f32 %v484, 0.0
        %v545 = vmax.f32 %v489, 0.0
        %v546 = vmax.f32 %v492, 0.0
        %v547 = vmax.f32 %v497, 0.0
        %v548 = vmax.f32 %v500, 0.0
        %v549 = vmax.f32 %v505, 0.0
        %v550 = vmax.f32 %v508, 0.0
        %v551 = vmax.f32 %v513, 0.0
        %v552 = vmax.f32 %v516, 0.0
        %v553 = vmax.f32 %v521, 0.0
        %v554 = vmax.f32 %v524, 0.0
        %v555 = vmax.f32 %v529, 0.0
        %v556 = vmax.f32 %v532, 0.0
        %v557 = vmax.f32 %v537, 0.0
        %v558 = vmax.f32 %v540, 0.0
        %v559 = vpack.c.bf16 %v544, %v543
        %v560 = vpack.c.bf16 %v546, %v545
        %v561 = vpack.c.bf16 %v548, %v547
        %v562 = vpack.c.bf16 %v550, %v549
        %v563 = vpack.c.bf16 %v552, %v551
        %v564 = vpack.c.bf16 %v554, %v553
        %v565 = vpack.c.bf16 %v556, %v555
        %v566 = vpack.c.bf16 %v558, %v557
        %v567 = vld [vmem:[#allocation7] sm:$0xf]
        %v568 = vld [vmem:[#allocation7 + $0x4] sm:$0xf]
        %v569 = vld [vmem:[#allocation7 + $0x8] sm:$0xf]
        %v570 = vld [vmem:[#allocation7 + $0xc] sm:$0xf]
        %v571 = vld [vmem:[#allocation7 + $0x10] sm:$0xf]
        %v572 = vld [vmem:[#allocation7 + $0x14] sm:$0xf]
        %v573 = vld [vmem:[#allocation7 + $0x18] sm:$0xf]
        %v574 = vld [vmem:[#allocation7 + $0x1c] sm:$0xf]
        %v575 = vld [vmem:[#allocation7 + $0x20] sm:$0xf]
        %v576 = vld [vmem:[#allocation7 + $0x24] sm:$0xf]
        %v577 = vld [vmem:[#allocation7 + $0x28] sm:$0xf]
        %v578 = vld [vmem:[#allocation7 + $0x2c] sm:$0xf]
        %v579 = vld [vmem:[#allocation7 + $0x30] sm:$0xf]
        %v580 = vld [vmem:[#allocation7 + $0x34] sm:$0xf]
        %v581 = vld [vmem:[#allocation7 + $0x38] sm:$0xf]
        %v582 = vld [vmem:[#allocation7 + $0x3c] sm:$0xf]
        %v599 = vunpack.c.l.b16 %v567
        %v600 = vunpack.c.l.b16 %v568
        %v601 = vunpack.c.l.b16 %v569
        %v602 = vunpack.c.l.b16 %v570
        %v603 = vunpack.c.l.b16 %v571
        %v604 = vunpack.c.l.b16 %v572
        %v605 = vunpack.c.l.b16 %v573
        %v606 = vunpack.c.l.b16 %v574
        %v607 = vunpack.c.l.b16 %v575
        %v608 = vunpack.c.l.b16 %v576
        %v609 = vunpack.c.l.b16 %v577
        %v610 = vunpack.c.l.b16 %v578
        %v611 = vunpack.c.l.b16 %v579
        %v612 = vunpack.c.l.b16 %v580
        %v613 = vunpack.c.l.b16 %v581
        %v614 = vunpack.c.l.b16 %v582
        %v615 = vpack.c.b16 %v600, %v599
        %v616 = vpack.c.b16 %v602, %v601
        %v617 = vpack.c.b16 %v604, %v603
        %v618 = vpack.c.b16 %v606, %v605
        %v619 = vpack.c.b16 %v608, %v607
        %v620 = vpack.c.b16 %v610, %v609
        %v621 = vpack.c.b16 %v612, %v611
        %v622 = vpack.c.b16 %v614, %v613
        %631 = vmatprep.subr.bf16.mxu0 0
        %632 = vmatpush1.bf16.msra.mxu0 %v622
        %633 = vmatprep.subr.bf16.mxu0 0
        %634 = vmatpush1.bf16.msra.mxu0 %v621
        %635 = vmatprep.subr.bf16.mxu0 0
        %636 = vmatpush1.bf16.msra.mxu0 %v620
        %637 = vmatprep.subr.bf16.mxu0 0
        %638 = vmatpush1.bf16.msra.mxu0 %v619
        %639 = vmatprep.subr.bf16.mxu0 0
        %640 = vmatpush1.bf16.msra.mxu0 %v618
        %641 = vmatprep.subr.bf16.mxu0 0
        %642 = vmatpush1.bf16.msra.mxu0 %v617
        %643 = vmatprep.subr.bf16.mxu0 0
        %644 = vmatpush1.bf16.msra.mxu0 %v616
        %645 = vmatprep.subr.bf16.mxu0 0
        %646 = vmatpush1.bf16.msra.mxu0 %v615
        %647 = vmatprep.subr.bf16.mxu0 0
        %648 = vmatpush2.bf16.msra.mxu0 0
        %649 = vmatprep.subr.bf16.mxu0 0
        %650 = vmatpush2.bf16.msra.mxu0 0
        %651 = vmatprep.subr.bf16.mxu0 0
        %652 = vmatpush2.bf16.msra.mxu0 0
        %653 = vmatprep.subr.bf16.mxu0 0
        %654 = vmatpush2.bf16.msra.mxu0 0
        %655 = vmatprep.subr.bf16.mxu0 0
        %656 = vmatpush2.bf16.msra.mxu0 0
        %657 = vmatprep.subr.bf16.mxu0 0
        %658 = vmatpush2.bf16.msra.mxu0 0
        %659 = vmatprep.subr.bf16.mxu0 0
        %660 = vmatpush2.bf16.msra.mxu0 0
        %661 = vmatprep.subr.bf16.mxu0 0
        %662 = vmatpush2.bf16.msra.mxu0 0
        %663 = vmatprep.mubr.bf16.mxu0 0
        %664 = vmatmul.mubr.bf16.gmra.mxu0 %v559
        %v665 = vpop.f32.mrf.mxu0
        %v666 = vadd.f32 0.0, %v665
        %v667 = vpop.f32.mrf.mxu0
        %v668 = vpop.f32.mrf.mxu0
        %v669 = vadd.f32 0.0, %v668
        %v670 = vpop.f32.mrf.mxu0
        %671 = vmatprep.mubr.bf16.mxu0 0
        %672 = vmatmul.mubr.bf16.gmra.mxu0 %v560
        %v673 = vpop.f32.mrf.mxu0
        %v674 = vadd.f32 0.0, %v673
        %v675 = vpop.f32.mrf.mxu0
        %v676 = vpop.f32.mrf.mxu0
        %v677 = vadd.f32 0.0, %v676
        %v678 = vpop.f32.mrf.mxu0
        %679 = vmatprep.mubr.bf16.mxu0 0
        %680 = vmatmul.mubr.bf16.gmra.mxu0 %v561
        %v681 = vpop.f32.mrf.mxu0
        %v682 = vadd.f32 0.0, %v681
        %v683 = vpop.f32.mrf.mxu0
        %v684 = vpop.f32.mrf.mxu0
        %v685 = vadd.f32 0.0, %v684
        %v686 = vpop.f32.mrf.mxu0
        %687 = vmatprep.mubr.bf16.mxu0 0
        %688 = vmatmul.mubr.bf16.gmra.mxu0 %v562
        %v689 = vpop.f32.mrf.mxu0
        %v690 = vadd.f32 0.0, %v689
        %v691 = vpop.f32.mrf.mxu0
        %v692 = vpop.f32.mrf.mxu0
        %v693 = vadd.f32 0.0, %v692
        %v694 = vpop.f32.mrf.mxu0
        %695 = vmatprep.mubr.bf16.mxu0 0
        %696 = vmatmul.mubr.bf16.gmra.mxu0 %v563
        %v697 = vpop.f32.mrf.mxu0
        %v698 = vadd.f32 0.0, %v697
        %v699 = vpop.f32.mrf.mxu0
        %v700 = vpop.f32.mrf.mxu0
        %v701 = vadd.f32 0.0, %v700
        %v702 = vpop.f32.mrf.mxu0
        %703 = vmatprep.mubr.bf16.mxu0 0
        %704 = vmatmul.mubr.bf16.gmra.mxu0 %v564
        %v705 = vpop.f32.mrf.mxu0
        %v706 = vadd.f32 0.0, %v705
        %v707 = vpop.f32.mrf.mxu0
        %v708 = vpop.f32.mrf.mxu0
        %v709 = vadd.f32 0.0, %v708
        %v710 = vpop.f32.mrf.mxu0
        %711 = vmatprep.mubr.bf16.mxu0 0
        %712 = vmatmul.mubr.bf16.gmra.mxu0 %v565
        %v713 = vpop.f32.mrf.mxu0
        %v714 = vadd.f32 0.0, %v713
        %v715 = vpop.f32.mrf.mxu0
        %v716 = vpop.f32.mrf.mxu0
        %v717 = vadd.f32 0.0, %v716
        %v718 = vpop.f32.mrf.mxu0
        %719 = vmatprep.mubr.bf16.mxu0 0
        %720 = vmatmul.mubr.bf16.gmra.mxu0 %v566
        %v721 = vpop.f32.mrf.mxu0
        %v722 = vadd.f32 0.0, %v721
        %v723 = vpop.f32.mrf.mxu0
        %v724 = vpop.f32.mrf.mxu0
        %v725 = vadd.f32 0.0, %v724
        %v726 = vpop.f32.mrf.mxu0
        %727 = vdwg.mxu0
        %728 = vst [vmem:[%s218] sm:$0xff] %v666
        %729 = vst [vmem:[%s218 + $0x8] sm:$0xff] %v669
        %730 = vst [vmem:[%s218 + $0x10] sm:$0xff] %v674
        %731 = vst [vmem:[%s218 + $0x18] sm:$0xff] %v677
        %732 = vst [vmem:[%s218 + $0x20] sm:$0xff] %v682
        %733 = vst [vmem:[%s218 + $0x28] sm:$0xff] %v685
        %734 = vst [vmem:[%s218 + $0x30] sm:$0xff] %v690
        %735 = vst [vmem:[%s218 + $0x38] sm:$0xff] %v693
        %736 = vst [vmem:[%s218 + $0x40] sm:$0xff] %v698
        %737 = vst [vmem:[%s218 + $0x48] sm:$0xff] %v701
        %738 = vst [vmem:[%s218 + $0x50] sm:$0xff] %v706
        %739 = vst [vmem:[%s218 + $0x58] sm:$0xff] %v709
        %740 = vst [vmem:[%s218 + $0x60] sm:$0xff] %v714
        %741 = vst [vmem:[%s218 + $0x68] sm:$0xff] %v717
        %742 = vst [vmem:[%s218 + $0x70] sm:$0xff] %v722
        %743 = vst [vmem:[%s218 + $0x78] sm:$0xff] %v725
        %s744 = sand.u32 %s97, 1
        %s745 = scalar_lea.sflag [#allocation4], %s744
        %s746 = sand.u32 %s97, 1
        %s747 = smul.addr %s746, 128
        %s748 = scalar_lea.vmem [#allocation8], %s747
        // Predicated region
        $region45: #{tpu_custom_call.1} parent=31 // pred_check
          %p749 = pneg %p107
        $region46: #{tpu_custom_call.1} parent=31 // pred_check_branch
          %751 = sbr.rel (%p749) target = $region48
        $region47: #{tpu_custom_call.1} parent=31 // pred_region
          %s752 = smul.u32 16, %s21
          %s754 = ssub.s32 2048, 2048
          %755 = vsyncadd %s745, %s754
          %s756 = smul.addr %s752, 128
          %s757 = scalar_lea.hbm %s3, %s756
          %s758 = sshll.u32 %s748, 4
          %s759 = int_to_ptr.vmem [resolvable:$true] %s758
          %764 = dma.vmem_to_hbm [thread:$0]  %s759, 2048, %s757, %s745, 128, 128, 8
        $region48: #{tpu_custom_call.1} parent=31 // pred_fallthru
          _
      $region32: #{tpu_custom_call.1} parent=5 // pred_fallthru
        _
      %p765 = scmp.le.s32.totalorder 2, %s16
      // Predicated region
      $region49: #{tpu_custom_call.1} parent=5 // pred_check
        %p766 = pneg %p765
      $region50: #{tpu_custom_call.1} parent=5 // pred_check_branch
        %768 = sbr.rel (%p766) target = $region52
      $region51: #{tpu_custom_call.1} parent=5 // pred_region
        %s769 = ssub.s32 %s16, 2
        // Predicated region
        $region53: #{tpu_custom_call.1} parent=51 // pred_check
          %p770 = pneg %p113
        $region54: #{tpu_custom_call.1} parent=51 // pred_check_branch
          %772 = sbr.rel (%p770) target = $region56
        $region55: #{tpu_custom_call.1} parent=51 // pred_region
          %s773 = sand.u32 %s98, 1
          %s774 = scalar_lea.sflag [#allocation4], %s773
          %s775 = sand.u32 %s98, 1
          %s776 = smul.addr %s775, 128
          %s777 = scalar_lea.vmem [#allocation8], %s776
          %778 = dma.done %s774, 2048
        $region56: #{tpu_custom_call.1} parent=51 // pred_fallthru
          _
      $region52: #{tpu_custom_call.1} parent=5 // pred_fallthru
        _
    $region6: #{tpu_custom_call.1} parent=1 // loop_footer
      %s20 = sadd.s32 1, %s16
    $region7: #{tpu_custom_call.1} parent=1 // loop_footer_branch
      %15 = sbr.rel target = $region3
    $region8: #{tpu_custom_call.1} parent=1 // loop_exit
      _
    %779 = vsyncpa [#allocation3], 1
    %s780 = scalar_lea.sflag [#allocation3], 1
    %781 = vsyncpa %s780, 1
    %782 = vsyncpa [#allocation6], 1
    %783 = vsyncpa [#allocation4], 1
    %s784 = scalar_lea.sflag [#allocation4], 1
    %785 = vsyncpa %s784, 1

</llo_original>
